<compile_context>
chip_gen: v5e
topology: v5e:2x2
jax: 0.10.0
libtpu: 0.0.40
codegen_flags: <defaults>
</compile_context>

<pallas_src>
import jax
import jax.numpy as jnp
from jax import lax
from jax.experimental import pallas as pl
from jax.experimental.pallas import tpu as pltpu


def memory_unit2_kernel(pu_ref, m_ref, arr_ref, b_ref, out_ref):
    """One (tb, E) tile of task embeddings -> one (tb, 2E) tile [pu | value]."""
    pu = pu_ref[...]       # (tb, E)  task-embedding rows for this tile
    m = m_ref[...]         # (K, E)   W @ (row-normalized array)   (resident)
    arr = arr_ref[...]     # (K, E)   raw memory array             (resident)
    bias = b_ref[...]      # (1, K)   Linear bias                  (resident)

    # cosine-sim + Linear folded into a single MXU matmul:
    #   cos = (pu @ arr_n.T) * q_inv ;  h = cos @ W.T + b
    #       = q_inv * (pu @ (W @ arr_n).T) + b     (exact: q_inv is per-row,
    #                                               ReLU comes after, b unscaled)
    # The +1e-5 is added per element INSIDE the norm sum (||x||^2 + E*1e-5),
    # exactly matching the reference cos_sim.
    q_inv = lax.rsqrt(jnp.sum(pu * pu + 1e-5, axis=-1, keepdims=True))    # (tb, 1)
    h = lax.dot_general(pu, m, (((1,), (1,)), ((), ())),
                        preferred_element_type=jnp.float32)               # (tb, K)
    h = jnp.maximum(q_inv * h + bias, 0.0)                                # ReLU

    # softmax over the K clusters (lane axis); approx reciprocal stays on EUP.
    mx = jnp.max(h, axis=-1, keepdims=True)
    e = jnp.exp(h - mx)
    atten = e * pl.reciprocal(jnp.sum(e, axis=-1, keepdims=True), approx=True)

    value = jnp.dot(atten, arr, preferred_element_type=jnp.float32)       # (tb, E)

    # In-kernel concat -> single lane-dense (tb, 2E) store.
    out_ref[...] = jnp.concatenate([pu, value], axis=-1)


def _round_up(x, m):
    return ((x + m - 1) // m) * m


def memory_unit2_forward(task_embed, array, w, b, *, block_b=2048):
    """task_embed: (B, E); array: (K, E); w: (K, K); b: (K,) -> (B, 2E).

    A (1, E) task_embed (the original module's interface) is just B == 1.
    On v7x, pass block_b ~= round_up(B/2, 8) so both TensorCores are used.
    """
    task_embed = task_embed.astype(jnp.float32)
    B, E = task_embed.shape
    K, _ = array.shape

    # Fold the Linear weight into the normalized memory array once, outside
    # the grid (tiny K x E compute).
    arr_n = array * lax.rsqrt(
        jnp.sum(array * array + 1e-5, axis=-1, keepdims=True))            # (K, E)
    m = (w @ arr_n).astype(jnp.float32)                                   # (K, E)
    b_row = b.reshape(1, K).astype(jnp.float32)

    # Large batch tiles, no input padding: grid = cdiv(B, tb) with a ragged
    # last block.  Edge-block garbage rows are never written back to HBM and
    # nothing reduces across the batch axis in-kernel, so this is safe.
    tb = min(block_b, _round_up(B, 8))
    grid = (pl.cdiv(B, tb),)

    return pl.pallas_call(
        memory_unit2_kernel,
        out_shape=jax.ShapeDtypeStruct((B, 2 * E), jnp.float32),
        grid_spec=pltpu.PrefetchScalarGridSpec(
            num_scalar_prefetch=0,
            grid=grid,
            in_specs=[
                pl.BlockSpec((tb, E), lambda i: (i, 0)),   # task embeddings (tiled)
                pl.BlockSpec((K, E), lambda i: (0, 0)),    # W @ arr_n   (resident)
                pl.BlockSpec((K, E), lambda i: (0, 0)),    # raw array   (resident)
                pl.BlockSpec((1, K), lambda i: (0, 0)),    # Linear bias (resident)
            ],
            out_specs=pl.BlockSpec((tb, 2 * E), lambda i: (i, 0)),
        ),
        compiler_params=pltpu.CompilerParams(
            dimension_semantics=("parallel",)),
    )(task_embed, m, array, b_row)


def _reference(task_embed, array, w, b):
    pu = task_embed                                                    # (B, E)
    q_norm = jnp.sqrt(jnp.sum(pu * pu + 1e-5, axis=1, keepdims=True))  # (B, 1)
    d_norm = jnp.sqrt(jnp.sum(array * array + 1e-5, axis=1))           # (K,)
    prod = pu @ array.T                                                # (B, K)
    cos = prod / (q_norm * d_norm[None, :])                            # (B, K)
    h = jnp.maximum(cos @ w.T + b[None, :], 0.0)                       # (B, K)
    atten = jax.nn.softmax(h, axis=-1)                                 # (B, K)
    value = atten @ array                                              # (B, E)
    return jnp.concatenate([pu, value], axis=1)


if __name__ == "__main__":
    clusters_k = 8
    emb_size = 32
    batch = 256   # batched tasks amortize launch/DMA overhead

    key = jax.random.PRNGKey(0)
    k_arr, k_w, k_b, k_x = jax.random.split(key, 4)

    # xavier_uniform for the memory array (K, E)
    bound_arr = (6.0 / (clusters_k + emb_size)) ** 0.5
    array = jax.random.uniform(
        k_arr, (clusters_k, emb_size), jnp.float32, -bound_arr, bound_arr)

    # torch.nn.Linear(n_k, n_k) default init
    bound_w = (1.0 / clusters_k) ** 0.5
    w = jax.random.uniform(
        k_w, (clusters_k, clusters_k), jnp.float32, -bound_w, bound_w)
    b = jax.random.uniform(
        k_b, (clusters_k,), jnp.float32, -bound_w, bound_w)

    task_embed = jax.random.normal(k_x, (batch, emb_size), jnp.float32)
    ref = _reference(task_embed, array, w, b)

    # Tolerance is relaxed slightly vs 1e-5: approx EUP reciprocal in the
    # softmax (~2^-14 rel) and the folded W@arr_n associativity change.
    out = jax.block_until_ready(memory_unit2_forward(task_embed, array, w, b))
    assert out.shape == (batch, 2 * emb_size)
    assert jnp.allclose(out, ref, atol=5e-4, rtol=5e-4)

    # Original module's (1, E) interface (B == 1, block padded to 8 rows).
    out1 = jax.block_until_ready(memory_unit2_forward(task_embed[:1], array, w, b))
    assert out1.shape == (1, 2 * emb_size)
    assert jnp.allclose(out1, ref[:1], atol=5e-4, rtol=5e-4)

    # Ragged last block (B not a multiple of 8, no padding in the wrapper).
    out_r = jax.block_until_ready(
        memory_unit2_forward(task_embed[:100], array, w, b))
    assert out_r.shape == (100, 2 * emb_size)
    assert jnp.allclose(out_r, ref[:100], atol=5e-4, rtol=5e-4)

    print("KERNEL_OK")
</pallas_src>

<mosaic_0001>
module attributes {stable_mosaic.version = 11 : i64} {
  func.func @memory_unit2_kernel(%arg0: i32, %arg1: memref<256x32xf32, #tpu.memory_space<vmem>>, %arg2: memref<8x32xf32, #tpu.memory_space<vmem>>, %arg3: memref<8x32xf32, #tpu.memory_space<vmem>>, %arg4: memref<1x8xf32, #tpu.memory_space<vmem>>, %arg5: memref<256x64xf32, #tpu.memory_space<vmem>>) attributes {dimension_semantics = [#tpu.dimension_semantics<parallel>], iteration_bounds = array<i64: 1>, scalar_prefetch = 0 : i64, scratch_operands = 0 : i64, tpu.core_type = #tpu.core_type<tc>, window_params = [{transform_indices = @transform_0, window_bounds = array<i64: 256, 32>}, {pipeline_mode = #tpu.pipeline_mode<synchronous>, transform_indices = @transform_1, window_bounds = array<i64: 8, 32>}, {pipeline_mode = #tpu.pipeline_mode<synchronous>, transform_indices = @transform_2, window_bounds = array<i64: 8, 32>}, {pipeline_mode = #tpu.pipeline_mode<synchronous>, transform_indices = @transform_3, window_bounds = array<i64: 1, 8>}, {transform_indices = @transform_4, window_bounds = array<i64: 256, 64>}]} {
    %c0 = arith.constant 0 : index
    %c0_0 = arith.constant 0 : index
    %0 = vector.load %arg1[%c0, %c0_0] : memref<256x32xf32, #tpu.memory_space<vmem>>, vector<256x32xf32>
    %c0_1 = arith.constant 0 : index
    %c0_2 = arith.constant 0 : index
    %1 = vector.load %arg2[%c0_1, %c0_2] : memref<8x32xf32, #tpu.memory_space<vmem>>, vector<8x32xf32>
    %c0_3 = arith.constant 0 : index
    %c0_4 = arith.constant 0 : index
    %2 = vector.load %arg3[%c0_3, %c0_4] : memref<8x32xf32, #tpu.memory_space<vmem>>, vector<8x32xf32>
    %c0_5 = arith.constant 0 : index
    %c0_6 = arith.constant 0 : index
    %3 = vector.load %arg4[%c0_5, %c0_6] : memref<1x8xf32, #tpu.memory_space<vmem>>, vector<1x8xf32>
    %4 = arith.mulf %0, %0 : vector<256x32xf32>
    %cst = arith.constant 9.99999974E-6 : f32
    %5 = vector.broadcast %cst : f32 to vector<256x32xf32>
    %6 = arith.addf %4, %5 : vector<256x32xf32>
    %cst_7 = arith.constant dense<0.000000e+00> : vector<256xf32>
    %7 = vector.multi_reduction <add>, %6, %cst_7 [1] : vector<256x32xf32> to vector<256xf32>
    %8 = vector.shape_cast %7 : vector<256xf32> to vector<256x1xf32>
    %9 = math.rsqrt %8 : vector<256x1xf32>
    %cst_8 = arith.constant dense<0.000000e+00> : vector<256x8xf32>
    %10 = tpu.matmul %0, %1, %cst_8 {dimension_numbers = #tpu.dot_dimension_numbers<[1], [1], [0], [0], [0, 0, 1, 0], [], []>} : vector<256x32xf32>, vector<8x32xf32>, vector<256x8xf32> -> vector<256x8xf32>
    %11 = vector.broadcast %9 : vector<256x1xf32> to vector<256x8xf32>
    %12 = arith.mulf %11, %10 : vector<256x8xf32>
    %13 = vector.broadcast %3 : vector<1x8xf32> to vector<256x8xf32>
    %14 = arith.addf %12, %13 : vector<256x8xf32>
    %cst_9 = arith.constant 0.000000e+00 : f32
    %15 = vector.broadcast %cst_9 : f32 to vector<256x8xf32>
    %16 = arith.maximumf %14, %15 : vector<256x8xf32>
    %cst_10 = arith.constant dense<0xFF800000> : vector<256xf32>
    %17 = vector.multi_reduction <maximumf>, %16, %cst_10 [1] : vector<256x8xf32> to vector<256xf32>
    %18 = vector.shape_cast %17 : vector<256xf32> to vector<256x1xf32>
    %19 = vector.broadcast %18 : vector<256x1xf32> to vector<256x8xf32>
    %20 = arith.subf %16, %19 : vector<256x8xf32>
    %21 = math.exp %20 : vector<256x8xf32>
    %cst_11 = arith.constant dense<0.000000e+00> : vector<256xf32>
    %22 = vector.multi_reduction <add>, %21, %cst_11 [1] : vector<256x8xf32> to vector<256xf32>
    %23 = vector.shape_cast %22 : vector<256xf32> to vector<256x1xf32>
    %24 = tpu.reciprocal %23 {approx = true} : vector<256x1xf32> -> vector<256x1xf32>
    %25 = vector.broadcast %24 : vector<256x1xf32> to vector<256x8xf32>
    %26 = arith.mulf %21, %25 : vector<256x8xf32>
    %cst_12 = arith.constant dense<0.000000e+00> : vector<256x32xf32>
    %27 = tpu.matmul %26, %2, %cst_12 {dimension_numbers = #tpu.dot_dimension_numbers<[1], [0], [0], [1], [0, 0, 1, 1], [], []>} : vector<256x8xf32>, vector<8x32xf32>, vector<256x32xf32> -> vector<256x32xf32>
    %28 = tpu.concatenate %0, %27 in 1 : vector<256x32xf32>, vector<256x32xf32> -> vector<256x64xf32>
    %c0_13 = arith.constant 0 : index
    %c0_14 = arith.constant 0 : index
    %29 = vector.load %arg5[%c0_13, %c0_14] : memref<256x64xf32, #tpu.memory_space<vmem>>, vector<256x64xf32>
    tpu.vector_store %arg5[%c0_13, %c0_14], %28 {strides = array<i32>} : memref<256x64xf32, #tpu.memory_space<vmem>>, vector<256x64xf32>,
    return
  }
  func.func @transform_0(%arg0: i32) -> (i32, i32) {
    %c0_i32 = arith.constant 0 : i32
    %c0_i32_0 = arith.constant 0 : i32
    return %arg0, %c0_i32 : i32, i32
  }
  func.func @transform_1(%arg0: i32) -> (i32, i32) {
    %c0_i32 = arith.constant 0 : i32
    %c0_i32_0 = arith.constant 0 : i32
    %c0_i32_1 = arith.constant 0 : i32
    return %c0_i32, %c0_i32_0 : i32, i32
  }
  func.func @transform_2(%arg0: i32) -> (i32, i32) {
    %c0_i32 = arith.constant 0 : i32
    %c0_i32_0 = arith.constant 0 : i32
    %c0_i32_1 = arith.constant 0 : i32
    return %c0_i32, %c0_i32_0 : i32, i32
  }
  func.func @transform_3(%arg0: i32) -> (i32, i32) {
    %c0_i32 = arith.constant 0 : i32
    %c0_i32_0 = arith.constant 0 : i32
    %c0_i32_1 = arith.constant 0 : i32
    return %c0_i32, %c0_i32_0 : i32, i32
  }
  func.func @transform_4(%arg0: i32) -> (i32, i32) {
    %c0_i32 = arith.constant 0 : i32
    %c0_i32_0 = arith.constant 0 : i32
    return %arg0, %c0_i32 : i32, i32
  }
}

</mosaic_0001>

<llo_original>
// kernel: tpu_custom_call.1
$region0: #{tpu_custom_call.1}
  #allocation0 [shape = 'u32[]', space=smem, size = 0x4, offset = 0x4, fixed_abs, tag = 'smem constant byte address 0x4 - core index']
  #allocation1 [shape = 'u32[72,128]{1,0:T(1,128)}', space=vmem, size = 0x9000, scoped, tag = 'internal scratch']
  %s0 = inlined_call_operand.vmem [shape: f32[256,32], index: 0, kind: input, shape index: {}]
  %s1 = inlined_call_operand.vmem [shape: f32[8,32], index: 1, kind: input, shape index: {}]
  %s2 = inlined_call_operand.vmem [shape: f32[8,32], index: 2, kind: input, shape index: {}]
  %s3 = inlined_call_operand.vmem [shape: f32[1,8], index: 3, kind: input, shape index: {}]
  %s4 = inlined_call_operand.vmem [shape: f32[256,64], index: 4, kind: output, shape index: {}]
  %s5 = sld [smem:[#allocation0]]
  $region26: #{tpu_custom_call.1} parent=0
    _
  %s7 = ssub.s32 1, %s5
  %s8 = scalar_select 0, %s7, %s5
  // Predicated region
  $region2: #{tpu_custom_call.1} parent=0 // pred_check
    _
  $region3: #{tpu_custom_call.1} parent=0 // pred_check_branch
    %10 = sbr.rel (0) target = $region5
  $region4: #{tpu_custom_call.1} parent=0 // pred_region
    _
  $region5: #{tpu_custom_call.1} parent=0 // pred_fallthru
    _
  // Predicated region
  $region6: #{tpu_custom_call.1} parent=0 // pred_check
    _
  $region7: #{tpu_custom_call.1} parent=0 // pred_check_branch
    %12 = sbr.rel (0) target = $region9
  $region8: #{tpu_custom_call.1} parent=0 // pred_region
    _
  $region9: #{tpu_custom_call.1} parent=0 // pred_fallthru
    _
  // Predicated region
  $region10: #{tpu_custom_call.1} parent=0 // pred_check
    _
  $region11: #{tpu_custom_call.1} parent=0 // pred_check_branch
    %14 = sbr.rel (0) target = $region13
  $region12: #{tpu_custom_call.1} parent=0 // pred_region
    _
  $region13: #{tpu_custom_call.1} parent=0 // pred_fallthru
    _
  // Predicated region
  $region14: #{tpu_custom_call.1} parent=0 // pred_check
    _
  $region15: #{tpu_custom_call.1} parent=0 // pred_check_branch
    %16 = sbr.rel (0) target = $region17
  $region16: #{tpu_custom_call.1} parent=0 // pred_region
    _
  $region17: #{tpu_custom_call.1} parent=0 // pred_fallthru
    _
  %v17 = vld [vmem:[%s0] sm:$0xff]
  %v18 = vld [vmem:[%s0 + $0x8] sm:$0xff]
  %v19 = vld [vmem:[%s0 + $0x10] sm:$0xff]
  %v20 = vld [vmem:[%s0 + $0x18] sm:$0xff]
  %v21 = vld [vmem:[%s0 + $0x20] sm:$0xff]
  %v22 = vld [vmem:[%s0 + $0x28] sm:$0xff]
  %v23 = vld [vmem:[%s0 + $0x30] sm:$0xff]
  %v24 = vld [vmem:[%s0 + $0x38] sm:$0xff]
  %v25 = vld [vmem:[%s0 + $0x40] sm:$0xff]
  %v26 = vld [vmem:[%s0 + $0x48] sm:$0xff]
  %v27 = vld [vmem:[%s0 + $0x50] sm:$0xff]
  %v28 = vld [vmem:[%s0 + $0x58] sm:$0xff]
  %v29 = vld [vmem:[%s0 + $0x60] sm:$0xff]
  %v30 = vld [vmem:[%s0 + $0x68] sm:$0xff]
  %v31 = vld [vmem:[%s0 + $0x70] sm:$0xff]
  %v32 = vld [vmem:[%s0 + $0x78] sm:$0xff]
  %v33 = vld [vmem:[%s0 + $0x80] sm:$0xff]
  %v34 = vld [vmem:[%s0 + $0x88] sm:$0xff]
  %v35 = vld [vmem:[%s0 + $0x90] sm:$0xff]
  %v36 = vld [vmem:[%s0 + $0x98] sm:$0xff]
  %v37 = vld [vmem:[%s0 + $0xa0] sm:$0xff]
  %v38 = vld [vmem:[%s0 + $0xa8] sm:$0xff]
  %v39 = vld [vmem:[%s0 + $0xb0] sm:$0xff]
  %v40 = vld [vmem:[%s0 + $0xb8] sm:$0xff]
  %v41 = vld [vmem:[%s0 + $0xc0] sm:$0xff]
  %v42 = vld [vmem:[%s0 + $0xc8] sm:$0xff]
  %v43 = vld [vmem:[%s0 + $0xd0] sm:$0xff]
  %v44 = vld [vmem:[%s0 + $0xd8] sm:$0xff]
  %v45 = vld [vmem:[%s0 + $0xe0] sm:$0xff]
  %v46 = vld [vmem:[%s0 + $0xe8] sm:$0xff]
  %v47 = vld [vmem:[%s0 + $0xf0] sm:$0xff]
  %v48 = vld [vmem:[%s0 + $0xf8] sm:$0xff]
  %v49 = vld [vmem:[%s1] sm:$0xff]
  %v50 = vld [vmem:[%s2] sm:$0xff]
  %v51 = vld [vmem:[%s3] sm:$0x1]
  %v52 = vmul.f32 %v17, %v17
  %v53 = vmul.f32 %v18, %v18
  %v54 = vmul.f32 %v19, %v19
  %v55 = vmul.f32 %v20, %v20
  %v56 = vmul.f32 %v21, %v21
  %v57 = vmul.f32 %v22, %v22
  %v58 = vmul.f32 %v23, %v23
  %v59 = vmul.f32 %v24, %v24
  %v60 = vmul.f32 %v25, %v25
  %v61 = vmul.f32 %v26, %v26
  %v62 = vmul.f32 %v27, %v27
  %v63 = vmul.f32 %v28, %v28
  %v64 = vmul.f32 %v29, %v29
  %v65 = vmul.f32 %v30, %v30
  %v66 = vmul.f32 %v31, %v31
  %v67 = vmul.f32 %v32, %v32
  %v68 = vmul.f32 %v33, %v33
  %v69 = vmul.f32 %v34, %v34
  %v70 = vmul.f32 %v35, %v35
  %v71 = vmul.f32 %v36, %v36
  %v72 = vmul.f32 %v37, %v37
  %v73 = vmul.f32 %v38, %v38
  %v74 = vmul.f32 %v39, %v39
  %v75 = vmul.f32 %v40, %v40
  %v76 = vmul.f32 %v41, %v41
  %v77 = vmul.f32 %v42, %v42
  %v78 = vmul.f32 %v43, %v43
  %v79 = vmul.f32 %v44, %v44
  %v80 = vmul.f32 %v45, %v45
  %v81 = vmul.f32 %v46, %v46
  %v82 = vmul.f32 %v47, %v47
  %v83 = vmul.f32 %v48, %v48
  %v84 = vadd.f32 %v52, 1e-05
  %v85 = vadd.f32 %v53, 1e-05
  %v86 = vadd.f32 %v54, 1e-05
  %v87 = vadd.f32 %v55, 1e-05
  %v88 = vadd.f32 %v56, 1e-05
  %v89 = vadd.f32 %v57, 1e-05
  %v90 = vadd.f32 %v58, 1e-05
  %v91 = vadd.f32 %v59, 1e-05
  %v92 = vadd.f32 %v60, 1e-05
  %v93 = vadd.f32 %v61, 1e-05
  %v94 = vadd.f32 %v62, 1e-05
  %v95 = vadd.f32 %v63, 1e-05
  %v96 = vadd.f32 %v64, 1e-05
  %v97 = vadd.f32 %v65, 1e-05
  %v98 = vadd.f32 %v66, 1e-05
  %v99 = vadd.f32 %v67, 1e-05
  %v100 = vadd.f32 %v68, 1e-05
  %v101 = vadd.f32 %v69, 1e-05
  %v102 = vadd.f32 %v70, 1e-05
  %v103 = vadd.f32 %v71, 1e-05
  %v104 = vadd.f32 %v72, 1e-05
  %v105 = vadd.f32 %v73, 1e-05
  %v106 = vadd.f32 %v74, 1e-05
  %v107 = vadd.f32 %v75, 1e-05
  %v108 = vadd.f32 %v76, 1e-05
  %v109 = vadd.f32 %v77, 1e-05
  %v110 = vadd.f32 %v78, 1e-05
  %v111 = vadd.f32 %v79, 1e-05
  %v112 = vadd.f32 %v80, 1e-05
  %v113 = vadd.f32 %v81, 1e-05
  %v114 = vadd.f32 %v82, 1e-05
  %v115 = vadd.f32 %v83, 1e-05
  %vm116 = vcmask 261120
  %v117 = vsel %vm116, %v84, 0.0
  %118 = vadd.xlane.f32.xlu0 %v117
  %v119 = vpop.xlane.xlu0 %118
  %v120 = vsel %vm116, %v85, 0.0
  %121 = vadd.xlane.f32.xlu0 %v120
  %v122 = vpop.xlane.xlu0 %121
  %v123 = vsel %vm116, %v86, 0.0
  %124 = vadd.xlane.f32.xlu0 %v123
  %v125 = vpop.xlane.xlu0 %124
  %v126 = vsel %vm116, %v87, 0.0
  %127 = vadd.xlane.f32.xlu0 %v126
  %v128 = vpop.xlane.xlu0 %127
  %v129 = vsel %vm116, %v88, 0.0
  %130 = vadd.xlane.f32.xlu0 %v129
  %v131 = vpop.xlane.xlu0 %130
  %v132 = vsel %vm116, %v89, 0.0
  %133 = vadd.xlane.f32.xlu0 %v132
  %v134 = vpop.xlane.xlu0 %133
  %v135 = vsel %vm116, %v90, 0.0
  %136 = vadd.xlane.f32.xlu0 %v135
  %v137 = vpop.xlane.xlu0 %136
  %v138 = vsel %vm116, %v91, 0.0
  %139 = vadd.xlane.f32.xlu0 %v138
  %v140 = vpop.xlane.xlu0 %139
  %v141 = vsel %vm116, %v92, 0.0
  %142 = vadd.xlane.f32.xlu0 %v141
  %v143 = vpop.xlane.xlu0 %142
  %v144 = vsel %vm116, %v93, 0.0
  %145 = vadd.xlane.f32.xlu0 %v144
  %v146 = vpop.xlane.xlu0 %145
  %v147 = vsel %vm116, %v94, 0.0
  %148 = vadd.xlane.f32.xlu0 %v147
  %v149 = vpop.xlane.xlu0 %148
  %v150 = vsel %vm116, %v95, 0.0
  %151 = vadd.xlane.f32.xlu0 %v150
  %v152 = vpop.xlane.xlu0 %151
  %v153 = vsel %vm116, %v96, 0.0
  %154 = vadd.xlane.f32.xlu0 %v153
  %v155 = vpop.xlane.xlu0 %154
  %v156 = vsel %vm116, %v97, 0.0
  %157 = vadd.xlane.f32.xlu0 %v156
  %v158 = vpop.xlane.xlu0 %157
  %v159 = vsel %vm116, %v98, 0.0
  %160 = vadd.xlane.f32.xlu0 %v159
  %v161 = vpop.xlane.xlu0 %160
  %v162 = vsel %vm116, %v99, 0.0
  %163 = vadd.xlane.f32.xlu0 %v162
  %v164 = vpop.xlane.xlu0 %163
  %v165 = vsel %vm116, %v100, 0.0
  %166 = vadd.xlane.f32.xlu0 %v165
  %v167 = vpop.xlane.xlu0 %166
  %v168 = vsel %vm116, %v101, 0.0
  %169 = vadd.xlane.f32.xlu0 %v168
  %v170 = vpop.xlane.xlu0 %169
  %v171 = vsel %vm116, %v102, 0.0
  %172 = vadd.xlane.f32.xlu0 %v171
  %v173 = vpop.xlane.xlu0 %172
  %v174 = vsel %vm116, %v103, 0.0
  %175 = vadd.xlane.f32.xlu0 %v174
  %v176 = vpop.xlane.xlu0 %175
  %v177 = vsel %vm116, %v104, 0.0
  %178 = vadd.xlane.f32.xlu0 %v177
  %v179 = vpop.xlane.xlu0 %178
  %v180 = vsel %vm116, %v105, 0.0
  %181 = vadd.xlane.f32.xlu0 %v180
  %v182 = vpop.xlane.xlu0 %181
  %v183 = vsel %vm116, %v106, 0.0
  %184 = vadd.xlane.f32.xlu0 %v183
  %v185 = vpop.xlane.xlu0 %184
  %v186 = vsel %vm116, %v107, 0.0
  %187 = vadd.xlane.f32.xlu0 %v186
  %v188 = vpop.xlane.xlu0 %187
  %v189 = vsel %vm116, %v108, 0.0
  %190 = vadd.xlane.f32.xlu0 %v189
  %v191 = vpop.xlane.xlu0 %190
  %v192 = vsel %vm116, %v109, 0.0
  %193 = vadd.xlane.f32.xlu0 %v192
  %v194 = vpop.xlane.xlu0 %193
  %v195 = vsel %vm116, %v110, 0.0
  %196 = vadd.xlane.f32.xlu0 %v195
  %v197 = vpop.xlane.xlu0 %196
  %v198 = vsel %vm116, %v111, 0.0
  %199 = vadd.xlane.f32.xlu0 %v198
  %v200 = vpop.xlane.xlu0 %199
  %v201 = vsel %vm116, %v112, 0.0
  %202 = vadd.xlane.f32.xlu0 %v201
  %v203 = vpop.xlane.xlu0 %202
  %v204 = vsel %vm116, %v113, 0.0
  %205 = vadd.xlane.f32.xlu0 %v204
  %v206 = vpop.xlane.xlu0 %205
  %v207 = vsel %vm116, %v114, 0.0
  %208 = vadd.xlane.f32.xlu0 %v207
  %v209 = vpop.xlane.xlu0 %208
  %v210 = vsel %vm116, %v115, 0.0
  %211 = vadd.xlane.f32.xlu0 %v210
  %v212 = vpop.xlane.xlu0 %211
  %v213 = vrsqrt.pop %v119
  %v214 = vmul.f32 %v213, %v119
  %v215 = vmul.f32 %v214, %v213
  %v216 = vmul.f32 0.5, %v215
  %v217 = vsub.f32 1.5, %v216
  %v218 = vmul.f32 %v213, %v217
  %vm219 = vweird.f32 %v119
  %vm220 = vweird.f32 %v213
  %vm221 = vmor %vm219, %vm220
  %v222 = vsel %vm221, %v213, %v218
  %v223 = vrsqrt.pop %v122
  %v224 = vmul.f32 %v223, %v122
  %v225 = vmul.f32 %v224, %v223
  %v226 = vmul.f32 0.5, %v225
  %v227 = vsub.f32 1.5, %v226
  %v228 = vmul.f32 %v223, %v227
  %vm229 = vweird.f32 %v122
  %vm230 = vweird.f32 %v223
  %vm231 = vmor %vm229, %vm230
  %v232 = vsel %vm231, %v223, %v228
  %v233 = vrsqrt.pop %v125
  %v234 = vmul.f32 %v233, %v125
  %v235 = vmul.f32 %v234, %v233
  %v236 = vmul.f32 0.5, %v235
  %v237 = vsub.f32 1.5, %v236
  %v238 = vmul.f32 %v233, %v237
  %vm239 = vweird.f32 %v125
  %vm240 = vweird.f32 %v233
  %vm241 = vmor %vm239, %vm240
  %v242 = vsel %vm241, %v233, %v238
  %v243 = vrsqrt.pop %v128
  %v244 = vmul.f32 %v243, %v128
  %v245 = vmul.f32 %v244, %v243
  %v246 = vmul.f32 0.5, %v245
  %v247 = vsub.f32 1.5, %v246
  %v248 = vmul.f32 %v243, %v247
  %vm249 = vweird.f32 %v128
  %vm250 = vweird.f32 %v243
  %vm251 = vmor %vm249, %vm250
  %v252 = vsel %vm251, %v243, %v248
  %v253 = vrsqrt.pop %v131
  %v254 = vmul.f32 %v253, %v131
  %v255 = vmul.f32 %v254, %v253
  %v256 = vmul.f32 0.5, %v255
  %v257 = vsub.f32 1.5, %v256
  %v258 = vmul.f32 %v253, %v257
  %vm259 = vweird.f32 %v131
  %vm260 = vweird.f32 %v253
  %vm261 = vmor %vm259, %vm260
  %v262 = vsel %vm261, %v253, %v258
  %v263 = vrsqrt.pop %v134
  %v264 = vmul.f32 %v263, %v134
  %v265 = vmul.f32 %v264, %v263
  %v266 = vmul.f32 0.5, %v265
  %v267 = vsub.f32 1.5, %v266
  %v268 = vmul.f32 %v263, %v267
  %vm269 = vweird.f32 %v134
  %vm270 = vweird.f32 %v263
  %vm271 = vmor %vm269, %vm270
  %v272 = vsel %vm271, %v263, %v268
  %v273 = vrsqrt.pop %v137
  %v274 = vmul.f32 %v273, %v137
  %v275 = vmul.f32 %v274, %v273
  %v276 = vmul.f32 0.5, %v275
  %v277 = vsub.f32 1.5, %v276
  %v278 = vmul.f32 %v273, %v277
  %vm279 = vweird.f32 %v137
  %vm280 = vweird.f32 %v273
  %vm281 = vmor %vm279, %vm280
  %v282 = vsel %vm281, %v273, %v278
  %v283 = vrsqrt.pop %v140
  %v284 = vmul.f32 %v283, %v140
  %v285 = vmul.f32 %v284, %v283
  %v286 = vmul.f32 0.5, %v285
  %v287 = vsub.f32 1.5, %v286
  %v288 = vmul.f32 %v283, %v287
  %vm289 = vweird.f32 %v140
  %vm290 = vweird.f32 %v283
  %vm291 = vmor %vm289, %vm290
  %v292 = vsel %vm291, %v283, %v288
  %v293 = vrsqrt.pop %v143
  %v294 = vmul.f32 %v293, %v143
  %v295 = vmul.f32 %v294, %v293
  %v296 = vmul.f32 0.5, %v295
  %v297 = vsub.f32 1.5, %v296
  %v298 = vmul.f32 %v293, %v297
  %vm299 = vweird.f32 %v143
  %vm300 = vweird.f32 %v293
  %vm301 = vmor %vm299, %vm300
  %v302 = vsel %vm301, %v293, %v298
  %v303 = vrsqrt.pop %v146
  %v304 = vmul.f32 %v303, %v146
  %v305 = vmul.f32 %v304, %v303
  %v306 = vmul.f32 0.5, %v305
  %v307 = vsub.f32 1.5, %v306
  %v308 = vmul.f32 %v303, %v307
  %vm309 = vweird.f32 %v146
  %vm310 = vweird.f32 %v303
  %vm311 = vmor %vm309, %vm310
  %v312 = vsel %vm311, %v303, %v308
  %v313 = vrsqrt.pop %v149
  %v314 = vmul.f32 %v313, %v149
  %v315 = vmul.f32 %v314, %v313
  %v316 = vmul.f32 0.5, %v315
  %v317 = vsub.f32 1.5, %v316
  %v318 = vmul.f32 %v313, %v317
  %vm319 = vweird.f32 %v149
  %vm320 = vweird.f32 %v313
  %vm321 = vmor %vm319, %vm320
  %v322 = vsel %vm321, %v313, %v318
  %v323 = vrsqrt.pop %v152
  %v324 = vmul.f32 %v323, %v152
  %v325 = vmul.f32 %v324, %v323
  %v326 = vmul.f32 0.5, %v325
  %v327 = vsub.f32 1.5, %v326
  %v328 = vmul.f32 %v323, %v327
  %vm329 = vweird.f32 %v152
  %vm330 = vweird.f32 %v323
  %vm331 = vmor %vm329, %vm330
  %v332 = vsel %vm331, %v323, %v328
  %v333 = vrsqrt.pop %v155
  %v334 = vmul.f32 %v333, %v155
  %v335 = vmul.f32 %v334, %v333
  %v336 = vmul.f32 0.5, %v335
  %v337 = vsub.f32 1.5, %v336
  %v338 = vmul.f32 %v333, %v337
  %vm339 = vweird.f32 %v155
  %vm340 = vweird.f32 %v333
  %vm341 = vmor %vm339, %vm340
  %v342 = vsel %vm341, %v333, %v338
  %v343 = vrsqrt.pop %v158
  %v344 = vmul.f32 %v343, %v158
  %v345 = vmul.f32 %v344, %v343
  %v346 = vmul.f32 0.5, %v345
  %v347 = vsub.f32 1.5, %v346
  %v348 = vmul.f32 %v343, %v347
  %vm349 = vweird.f32 %v158
  %vm350 = vweird.f32 %v343
  %vm351 = vmor %vm349, %vm350
  %v352 = vsel %vm351, %v343, %v348
  %v353 = vrsqrt.pop %v161
  %v354 = vmul.f32 %v353, %v161
  %v355 = vmul.f32 %v354, %v353
  %v356 = vmul.f32 0.5, %v355
  %v357 = vsub.f32 1.5, %v356
  %v358 = vmul.f32 %v353, %v357
  %vm359 = vweird.f32 %v161
  %vm360 = vweird.f32 %v353
  %vm361 = vmor %vm359, %vm360
  %v362 = vsel %vm361, %v353, %v358
  %v363 = vrsqrt.pop %v164
  %v364 = vmul.f32 %v363, %v164
  %v365 = vmul.f32 %v364, %v363
  %v366 = vmul.f32 0.5, %v365
  %v367 = vsub.f32 1.5, %v366
  %v368 = vmul.f32 %v363, %v367
  %vm369 = vweird.f32 %v164
  %vm370 = vweird.f32 %v363
  %vm371 = vmor %vm369, %vm370
  %v372 = vsel %vm371, %v363, %v368
  %v373 = vrsqrt.pop %v167
  %v374 = vmul.f32 %v373, %v167
  %v375 = vmul.f32 %v374, %v373
  %v376 = vmul.f32 0.5, %v375
  %v377 = vsub.f32 1.5, %v376
  %v378 = vmul.f32 %v373, %v377
  %vm379 = vweird.f32 %v167
  %vm380 = vweird.f32 %v373
  %vm381 = vmor %vm379, %vm380
  %v382 = vsel %vm381, %v373, %v378
  %v383 = vrsqrt.pop %v170
  %v384 = vmul.f32 %v383, %v170
  %v385 = vmul.f32 %v384, %v383
  %v386 = vmul.f32 0.5, %v385
  %v387 = vsub.f32 1.5, %v386
  %v388 = vmul.f32 %v383, %v387
  %vm389 = vweird.f32 %v170
  %vm390 = vweird.f32 %v383
  %vm391 = vmor %vm389, %vm390
  %v392 = vsel %vm391, %v383, %v388
  %v393 = vrsqrt.pop %v173
  %v394 = vmul.f32 %v393, %v173
  %v395 = vmul.f32 %v394, %v393
  %v396 = vmul.f32 0.5, %v395
  %v397 = vsub.f32 1.5, %v396
  %v398 = vmul.f32 %v393, %v397
  %vm399 = vweird.f32 %v173
  %vm400 = vweird.f32 %v393
  %vm401 = vmor %vm399, %vm400
  %v402 = vsel %vm401, %v393, %v398
  %v403 = vrsqrt.pop %v176
  %v404 = vmul.f32 %v403, %v176
  %v405 = vmul.f32 %v404, %v403
  %v406 = vmul.f32 0.5, %v405
  %v407 = vsub.f32 1.5, %v406
  %v408 = vmul.f32 %v403, %v407
  %vm409 = vweird.f32 %v176
  %vm410 = vweird.f32 %v403
  %vm411 = vmor %vm409, %vm410
  %v412 = vsel %vm411, %v403, %v408
  %v413 = vrsqrt.pop %v179
  %v414 = vmul.f32 %v413, %v179
  %v415 = vmul.f32 %v414, %v413
  %v416 = vmul.f32 0.5, %v415
  %v417 = vsub.f32 1.5, %v416
  %v418 = vmul.f32 %v413, %v417
  %vm419 = vweird.f32 %v179
  %vm420 = vweird.f32 %v413
  %vm421 = vmor %vm419, %vm420
  %v422 = vsel %vm421, %v413, %v418
  %v423 = vrsqrt.pop %v182
  %v424 = vmul.f32 %v423, %v182
  %v425 = vmul.f32 %v424, %v423
  %v426 = vmul.f32 0.5, %v425
  %v427 = vsub.f32 1.5, %v426
  %v428 = vmul.f32 %v423, %v427
  %vm429 = vweird.f32 %v182
  %vm430 = vweird.f32 %v423
  %vm431 = vmor %vm429, %vm430
  %v432 = vsel %vm431, %v423, %v428
  %v433 = vrsqrt.pop %v185
  %v434 = vmul.f32 %v433, %v185
  %v435 = vmul.f32 %v434, %v433
  %v436 = vmul.f32 0.5, %v435
  %v437 = vsub.f32 1.5, %v436
  %v438 = vmul.f32 %v433, %v437
  %vm439 = vweird.f32 %v185
  %vm440 = vweird.f32 %v433
  %vm441 = vmor %vm439, %vm440
  %v442 = vsel %vm441, %v433, %v438
  %v443 = vrsqrt.pop %v188
  %v444 = vmul.f32 %v443, %v188
  %v445 = vmul.f32 %v444, %v443
  %v446 = vmul.f32 0.5, %v445
  %v447 = vsub.f32 1.5, %v446
  %v448 = vmul.f32 %v443, %v447
  %vm449 = vweird.f32 %v188
  %vm450 = vweird.f32 %v443
  %vm451 = vmor %vm449, %vm450
  %v452 = vsel %vm451, %v443, %v448
  %v453 = vrsqrt.pop %v191
  %v454 = vmul.f32 %v453, %v191
  %v455 = vmul.f32 %v454, %v453
  %v456 = vmul.f32 0.5, %v455
  %v457 = vsub.f32 1.5, %v456
  %v458 = vmul.f32 %v453, %v457
  %vm459 = vweird.f32 %v191
  %vm460 = vweird.f32 %v453
  %vm461 = vmor %vm459, %vm460
  %v462 = vsel %vm461, %v453, %v458
  %v463 = vrsqrt.pop %v194
  %v464 = vmul.f32 %v463, %v194
  %v465 = vmul.f32 %v464, %v463
  %v466 = vmul.f32 0.5, %v465
  %v467 = vsub.f32 1.5, %v466
  %v468 = vmul.f32 %v463, %v467
  %vm469 = vweird.f32 %v194
  %vm470 = vweird.f32 %v463
  %vm471 = vmor %vm469, %vm470
  %v472 = vsel %vm471, %v463, %v468
  %v473 = vrsqrt.pop %v197
  %v474 = vmul.f32 %v473, %v197
  %v475 = vmul.f32 %v474, %v473
  %v476 = vmul.f32 0.5, %v475
  %v477 = vsub.f32 1.5, %v476
  %v478 = vmul.f32 %v473, %v477
  %vm479 = vweird.f32 %v197
  %vm480 = vweird.f32 %v473
  %vm481 = vmor %vm479, %vm480
  %v482 = vsel %vm481, %v473, %v478
  %v483 = vrsqrt.pop %v200
  %v484 = vmul.f32 %v483, %v200
  %v485 = vmul.f32 %v484, %v483
  %v486 = vmul.f32 0.5, %v485
  %v487 = vsub.f32 1.5, %v486
  %v488 = vmul.f32 %v483, %v487
  %vm489 = vweird.f32 %v200
  %vm490 = vweird.f32 %v483
  %vm491 = vmor %vm489, %vm490
  %v492 = vsel %vm491, %v483, %v488
  %v493 = vrsqrt.pop %v203
  %v494 = vmul.f32 %v493, %v203
  %v495 = vmul.f32 %v494, %v493
  %v496 = vmul.f32 0.5, %v495
  %v497 = vsub.f32 1.5, %v496
  %v498 = vmul.f32 %v493, %v497
  %vm499 = vweird.f32 %v203
  %vm500 = vweird.f32 %v493
  %vm501 = vmor %vm499, %vm500
  %v502 = vsel %vm501, %v493, %v498
  %v503 = vrsqrt.pop %v206
  %v504 = vmul.f32 %v503, %v206
  %v505 = vmul.f32 %v504, %v503
  %v506 = vmul.f32 0.5, %v505
  %v507 = vsub.f32 1.5, %v506
  %v508 = vmul.f32 %v503, %v507
  %vm509 = vweird.f32 %v206
  %vm510 = vweird.f32 %v503
  %vm511 = vmor %vm509, %vm510
  %v512 = vsel %vm511, %v503, %v508
  %v513 = vrsqrt.pop %v209
  %v514 = vmul.f32 %v513, %v209
  %v515 = vmul.f32 %v514, %v513
  %v516 = vmul.f32 0.5, %v515
  %v517 = vsub.f32 1.5, %v516
  %v518 = vmul.f32 %v513, %v517
  %vm519 = vweird.f32 %v209
  %vm520 = vweird.f32 %v513
  %vm521 = vmor %vm519, %vm520
  %v522 = vsel %vm521, %v513, %v518
  %v523 = vrsqrt.pop %v212
  %v524 = vmul.f32 %v523, %v212
  %v525 = vmul.f32 %v524, %v523
  %v526 = vmul.f32 0.5, %v525
  %v527 = vsub.f32 1.5, %v526
  %v528 = vmul.f32 %v523, %v527
  %vm529 = vweird.f32 %v212
  %vm530 = vweird.f32 %v523
  %vm531 = vmor %vm529, %vm530
  %v532 = vsel %vm531, %v523, %v528
  %v534 = vsel %vm116, %v17, 0
  %v537 = vsel %vm116, %v18, 0
  %v540 = vsel %vm116, %v19, 0
  %v543 = vsel %vm116, %v20, 0
  %v546 = vsel %vm116, %v21, 0
  %v549 = vsel %vm116, %v22, 0
  %v552 = vsel %vm116, %v23, 0
  %v555 = vsel %vm116, %v24, 0
  %v558 = vsel %vm116, %v25, 0
  %v561 = vsel %vm116, %v26, 0
  %v564 = vsel %vm116, %v27, 0
  %v567 = vsel %vm116, %v28, 0
  %v570 = vsel %vm116, %v29, 0
  %v573 = vsel %vm116, %v30, 0
  %v576 = vsel %vm116, %v31, 0
  %v579 = vsel %vm116, %v32, 0
  %v582 = vsel %vm116, %v33, 0
  %v585 = vsel %vm116, %v34, 0
  %v588 = vsel %vm116, %v35, 0
  %v591 = vsel %vm116, %v36, 0
  %v594 = vsel %vm116, %v37, 0
  %v597 = vsel %vm116, %v38, 0
  %v600 = vsel %vm116, %v39, 0
  %v603 = vsel %vm116, %v40, 0
  %v606 = vsel %vm116, %v41, 0
  %v609 = vsel %vm116, %v42, 0
  %v612 = vsel %vm116, %v43, 0
  %v615 = vsel %vm116, %v44, 0
  %v618 = vsel %vm116, %v45, 0
  %v621 = vsel %vm116, %v46, 0
  %v624 = vsel %vm116, %v47, 0
  %v627 = vsel %vm116, %v48, 0
  %v630 = vsel %vm116, %v49, 0
  %632 = vmatpush.xpose.msra.mxu0 0.0
  %633 = vmatpush.xpose.msra.mxu0 0.0
  %634 = vmatpush.xpose.msra.mxu0 0.0
  %635 = vmatpush.xpose.msra.mxu0 0.0
  %636 = vmatpush.xpose.msra.mxu0 0.0
  %637 = vmatpush.xpose.msra.mxu0 0.0
  %638 = vmatpush.xpose.msra.mxu0 0.0
  %639 = vmatpush.xpose.msra.mxu0 0.0
  %640 = vmatpush.xpose.msra.mxu0 0.0
  %641 = vmatpush.xpose.msra.mxu0 0.0
  %642 = vmatpush.xpose.msra.mxu0 0.0
  %643 = vmatpush.xpose.msra.mxu0 0.0
  %644 = vmatpush.xpose.msra.mxu0 0.0
  %645 = vmatpush.xpose.msra.mxu0 0.0
  %646 = vmatpush.xpose.msra.mxu0 0.0
  %647 = vmatpush.xpose.msra.mxu0 %v630
  %648 = vmatmul.f32.gmra.mxu0 %v534
  %v649 = vpop.f32.mrf.mxu0
  %v650 = vadd.f32 0.0, %v649
  %651 = vmatmul.f32.gmra.mxu0 %v537
  %v652 = vpop.f32.mrf.mxu0
  %v653 = vadd.f32 0.0, %v652
  %654 = vmatmul.f32.gmra.mxu0 %v540
  %v655 = vpop.f32.mrf.mxu0
  %v656 = vadd.f32 0.0, %v655
  %657 = vmatmul.f32.gmra.mxu0 %v543
  %v658 = vpop.f32.mrf.mxu0
  %v659 = vadd.f32 0.0, %v658
  %660 = vmatmul.f32.gmra.mxu0 %v546
  %v661 = vpop.f32.mrf.mxu0
  %v662 = vadd.f32 0.0, %v661
  %663 = vmatmul.f32.gmra.mxu0 %v549
  %v664 = vpop.f32.mrf.mxu0
  %v665 = vadd.f32 0.0, %v664
  %666 = vmatmul.f32.gmra.mxu0 %v552
  %v667 = vpop.f32.mrf.mxu0
  %v668 = vadd.f32 0.0, %v667
  %669 = vmatmul.f32.gmra.mxu0 %v555
  %v670 = vpop.f32.mrf.mxu0
  %v671 = vadd.f32 0.0, %v670
  %672 = vmatmul.f32.gmra.mxu0 %v558
  %v673 = vpop.f32.mrf.mxu0
  %v674 = vadd.f32 0.0, %v673
  %675 = vmatmul.f32.gmra.mxu0 %v561
  %v676 = vpop.f32.mrf.mxu0
  %v677 = vadd.f32 0.0, %v676
  %678 = vmatmul.f32.gmra.mxu0 %v564
  %v679 = vpop.f32.mrf.mxu0
  %v680 = vadd.f32 0.0, %v679
  %681 = vmatmul.f32.gmra.mxu0 %v567
  %v682 = vpop.f32.mrf.mxu0
  %v683 = vadd.f32 0.0, %v682
  %684 = vmatmul.f32.gmra.mxu0 %v570
  %v685 = vpop.f32.mrf.mxu0
  %v686 = vadd.f32 0.0, %v685
  %687 = vmatmul.f32.gmra.mxu0 %v573
  %v688 = vpop.f32.mrf.mxu0
  %v689 = vadd.f32 0.0, %v688
  %690 = vmatmul.f32.gmra.mxu0 %v576
  %v691 = vpop.f32.mrf.mxu0
  %v692 = vadd.f32 0.0, %v691
  %693 = vmatmul.f32.gmra.mxu0 %v579
  %v694 = vpop.f32.mrf.mxu0
  %v695 = vadd.f32 0.0, %v694
  %696 = vmatmul.f32.gmra.mxu0 %v582
  %v697 = vpop.f32.mrf.mxu0
  %v698 = vadd.f32 0.0, %v697
  %699 = vmatmul.f32.gmra.mxu0 %v585
  %v700 = vpop.f32.mrf.mxu0
  %v701 = vadd.f32 0.0, %v700
  %702 = vmatmul.f32.gmra.mxu0 %v588
  %v703 = vpop.f32.mrf.mxu0
  %v704 = vadd.f32 0.0, %v703
  %705 = vmatmul.f32.gmra.mxu0 %v591
  %v706 = vpop.f32.mrf.mxu0
  %v707 = vadd.f32 0.0, %v706
  %708 = vmatmul.f32.gmra.mxu0 %v594
  %v709 = vpop.f32.mrf.mxu0
  %v710 = vadd.f32 0.0, %v709
  %711 = vmatmul.f32.gmra.mxu0 %v597
  %v712 = vpop.f32.mrf.mxu0
  %v713 = vadd.f32 0.0, %v712
  %714 = vmatmul.f32.gmra.mxu0 %v600
  %v715 = vpop.f32.mrf.mxu0
  %v716 = vadd.f32 0.0, %v715
  %717 = vmatmul.f32.gmra.mxu0 %v603
  %v718 = vpop.f32.mrf.mxu0
  %v719 = vadd.f32 0.0, %v718
  %720 = vmatmul.f32.gmra.mxu0 %v606
  %v721 = vpop.f32.mrf.mxu0
  %v722 = vadd.f32 0.0, %v721
  %723 = vmatmul.f32.gmra.mxu0 %v609
  %v724 = vpop.f32.mrf.mxu0
  %v725 = vadd.f32 0.0, %v724
  %726 = vmatmul.f32.gmra.mxu0 %v612
  %v727 = vpop.f32.mrf.mxu0
  %v728 = vadd.f32 0.0, %v727
  %729 = vmatmul.f32.gmra.mxu0 %v615
  %v730 = vpop.f32.mrf.mxu0
  %v731 = vadd.f32 0.0, %v730
  %732 = vmatmul.f32.gmra.mxu0 %v618
  %v733 = vpop.f32.mrf.mxu0
  %v734 = vadd.f32 0.0, %v733
  %735 = vmatmul.f32.gmra.mxu0 %v621
  %v736 = vpop.f32.mrf.mxu0
  %v737 = vadd.f32 0.0, %v736
  %738 = vmatmul.f32.gmra.mxu0 %v624
  %v739 = vpop.f32.mrf.mxu0
  %v740 = vadd.f32 0.0, %v739
  %741 = vmatmul.f32.gmra.mxu0 %v627
  %v742 = vpop.f32.mrf.mxu0
  %v743 = vadd.f32 0.0, %v742
  %744 = vdwg.mxu0
  %v745 = vmul.f32 %v222, %v650
  %v746 = vmul.f32 %v232, %v653
  %v747 = vmul.f32 %v242, %v656
  %v748 = vmul.f32 %v252, %v659
  %v749 = vmul.f32 %v262, %v662
  %v750 = vmul.f32 %v272, %v665
  %v751 = vmul.f32 %v282, %v668
  %v752 = vmul.f32 %v292, %v671
  %v753 = vmul.f32 %v302, %v674
  %v754 = vmul.f32 %v312, %v677
  %v755 = vmul.f32 %v322, %v680
  %v756 = vmul.f32 %v332, %v683
  %v757 = vmul.f32 %v342, %v686
  %v758 = vmul.f32 %v352, %v689
  %v759 = vmul.f32 %v362, %v692
  %v760 = vmul.f32 %v372, %v695
  %v761 = vmul.f32 %v382, %v698
  %v762 = vmul.f32 %v392, %v701
  %v763 = vmul.f32 %v402, %v704
  %v764 = vmul.f32 %v412, %v707
  %v765 = vmul.f32 %v422, %v710
  %v766 = vmul.f32 %v432, %v713
  %v767 = vmul.f32 %v442, %v716
  %v768 = vmul.f32 %v452, %v719
  %v769 = vmul.f32 %v462, %v722
  %v770 = vmul.f32 %v472, %v725
  %v771 = vmul.f32 %v482, %v728
  %v772 = vmul.f32 %v492, %v731
  %v773 = vmul.f32 %v502, %v734
  %v774 = vmul.f32 %v512, %v737
  %v775 = vmul.f32 %v522, %v740
  %v776 = vmul.f32 %v532, %v743
  %v778 = vperm.slane %v51, 0
  %v780 = vadd.f32 %v745, %v778
  %v781 = vadd.f32 %v746, %v778
  %v782 = vadd.f32 %v747, %v778
  %v783 = vadd.f32 %v748, %v778
  %v784 = vadd.f32 %v749, %v778
  %v785 = vadd.f32 %v750, %v778
  %v786 = vadd.f32 %v751, %v778
  %v787 = vadd.f32 %v752, %v778
  %v788 = vadd.f32 %v753, %v778
  %v789 = vadd.f32 %v754, %v778
  %v790 = vadd.f32 %v755, %v778
  %v791 = vadd.f32 %v756, %v778
  %v792 = vadd.f32 %v757, %v778
  %v793 = vadd.f32 %v758, %v778
  %v794 = vadd.f32 %v759, %v778
  %v795 = vadd.f32 %v760, %v778
  %v796 = vadd.f32 %v761, %v778
  %v797 = vadd.f32 %v762, %v778
  %v798 = vadd.f32 %v763, %v778
  %v799 = vadd.f32 %v764, %v778
  %v800 = vadd.f32 %v765, %v778
  %v801 = vadd.f32 %v766, %v778
  %v802 = vadd.f32 %v767, %v778
  %v803 = vadd.f32 %v768, %v778
  %v804 = vadd.f32 %v769, %v778
  %v805 = vadd.f32 %v770, %v778
  %v806 = vadd.f32 %v771, %v778
  %v807 = vadd.f32 %v772, %v778
  %v808 = vadd.f32 %v773, %v778
  %v809 = vadd.f32 %v774, %v778
  %v810 = vadd.f32 %v775, %v778
  %v811 = vadd.f32 %v776, %v778
  %v812 = vmax.f32 %v780, 0.0
  %v813 = vmax.f32 %v781, 0.0
  %v814 = vmax.f32 %v782, 0.0
  %v815 = vmax.f32 %v783, 0.0
  %v816 = vmax.f32 %v784, 0.0
  %v817 = vmax.f32 %v785, 0.0
  %v818 = vmax.f32 %v786, 0.0
  %v819 = vmax.f32 %v787, 0.0
  %v820 = vmax.f32 %v788, 0.0
  %v821 = vmax.f32 %v789, 0.0
  %v822 = vmax.f32 %v790, 0.0
  %v823 = vmax.f32 %v791, 0.0
  %v824 = vmax.f32 %v792, 0.0
  %v825 = vmax.f32 %v793, 0.0
  %v826 = vmax.f32 %v794, 0.0
  %v827 = vmax.f32 %v795, 0.0
  %v828 = vmax.f32 %v796, 0.0
  %v829 = vmax.f32 %v797, 0.0
  %v830 = vmax.f32 %v798, 0.0
  %v831 = vmax.f32 %v799, 0.0
  %v832 = vmax.f32 %v800, 0.0
  %v833 = vmax.f32 %v801, 0.0
  %v834 = vmax.f32 %v802, 0.0
  %v835 = vmax.f32 %v803, 0.0
  %v836 = vmax.f32 %v804, 0.0
  %v837 = vmax.f32 %v805, 0.0
  %v838 = vmax.f32 %v806, 0.0
  %v839 = vmax.f32 %v807, 0.0
  %v840 = vmax.f32 %v808, 0.0
  %v841 = vmax.f32 %v809, 0.0
  %v842 = vmax.f32 %v810, 0.0
  %v843 = vmax.f32 %v811, 0.0
  %vm844 = vcmask 64512
  %v845 = vsel %vm844, %v812, -inf
  %846 = vmax.xlane.f32.xlu0 %v845
  %v847 = vpop.xlane.xlu0 %846
  %v848 = vsel %vm844, %v813, -inf
  %849 = vmax.xlane.f32.xlu0 %v848
  %v850 = vpop.xlane.xlu0 %849
  %v851 = vsel %vm844, %v814, -inf
  %852 = vmax.xlane.f32.xlu0 %v851
  %v853 = vpop.xlane.xlu0 %852
  %v854 = vsel %vm844, %v815, -inf
  %855 = vmax.xlane.f32.xlu0 %v854
  %v856 = vpop.xlane.xlu0 %855
  %v857 = vsel %vm844, %v816, -inf
  %858 = vmax.xlane.f32.xlu0 %v857
  %v859 = vpop.xlane.xlu0 %858
  %v860 = vsel %vm844, %v817, -inf
  %861 = vmax.xlane.f32.xlu0 %v860
  %v862 = vpop.xlane.xlu0 %861
  %v863 = vsel %vm844, %v818, -inf
  %864 = vmax.xlane.f32.xlu0 %v863
  %v865 = vpop.xlane.xlu0 %864
  %v866 = vsel %vm844, %v819, -inf
  %867 = vmax.xlane.f32.xlu0 %v866
  %v868 = vpop.xlane.xlu0 %867
  %v869 = vsel %vm844, %v820, -inf
  %870 = vmax.xlane.f32.xlu0 %v869
  %v871 = vpop.xlane.xlu0 %870
  %v872 = vsel %vm844, %v821, -inf
  %873 = vmax.xlane.f32.xlu0 %v872
  %v874 = vpop.xlane.xlu0 %873
  %v875 = vsel %vm844, %v822, -inf
  %876 = vmax.xlane.f32.xlu0 %v875
  %v877 = vpop.xlane.xlu0 %876
  %v878 = vsel %vm844, %v823, -inf
  %879 = vmax.xlane.f32.xlu0 %v878
  %v880 = vpop.xlane.xlu0 %879
  %v881 = vsel %vm844, %v824, -inf
  %882 = vmax.xlane.f32.xlu0 %v881
  %v883 = vpop.xlane.xlu0 %882
  %v884 = vsel %vm844, %v825, -inf
  %885 = vmax.xlane.f32.xlu0 %v884
  %v886 = vpop.xlane.xlu0 %885
  %v887 = vsel %vm844, %v826, -inf
  %888 = vmax.xlane.f32.xlu0 %v887
  %v889 = vpop.xlane.xlu0 %888
  %v890 = vsel %vm844, %v827, -inf
  %891 = vmax.xlane.f32.xlu0 %v890
  %v892 = vpop.xlane.xlu0 %891
  %v893 = vsel %vm844, %v828, -inf
  %894 = vmax.xlane.f32.xlu0 %v893
  %v895 = vpop.xlane.xlu0 %894
  %v896 = vsel %vm844, %v829, -inf
  %897 = vmax.xlane.f32.xlu0 %v896
  %v898 = vpop.xlane.xlu0 %897
  %v899 = vsel %vm844, %v830, -inf
  %900 = vmax.xlane.f32.xlu0 %v899
  %v901 = vpop.xlane.xlu0 %900
  %v902 = vsel %vm844, %v831, -inf
  %903 = vmax.xlane.f32.xlu0 %v902
  %v904 = vpop.xlane.xlu0 %903
  %v905 = vsel %vm844, %v832, -inf
  %906 = vmax.xlane.f32.xlu0 %v905
  %v907 = vpop.xlane.xlu0 %906
  %v908 = vsel %vm844, %v833, -inf
  %909 = vmax.xlane.f32.xlu0 %v908
  %v910 = vpop.xlane.xlu0 %909
  %v911 = vsel %vm844, %v834, -inf
  %912 = vmax.xlane.f32.xlu0 %v911
  %v913 = vpop.xlane.xlu0 %912
  %v914 = vsel %vm844, %v835, -inf
  %915 = vmax.xlane.f32.xlu0 %v914
  %v916 = vpop.xlane.xlu0 %915
  %v917 = vsel %vm844, %v836, -inf
  %918 = vmax.xlane.f32.xlu0 %v917
  %v919 = vpop.xlane.xlu0 %918
  %v920 = vsel %vm844, %v837, -inf
  %921 = vmax.xlane.f32.xlu0 %v920
  %v922 = vpop.xlane.xlu0 %921
  %v923 = vsel %vm844, %v838, -inf
  %924 = vmax.xlane.f32.xlu0 %v923
  %v925 = vpop.xlane.xlu0 %924
  %v926 = vsel %vm844, %v839, -inf
  %927 = vmax.xlane.f32.xlu0 %v926
  %v928 = vpop.xlane.xlu0 %927
  %v929 = vsel %vm844, %v840, -inf
  %930 = vmax.xlane.f32.xlu0 %v929
  %v931 = vpop.xlane.xlu0 %930
  %v932 = vsel %vm844, %v841, -inf
  %933 = vmax.xlane.f32.xlu0 %v932
  %v934 = vpop.xlane.xlu0 %933
  %v935 = vsel %vm844, %v842, -inf
  %936 = vmax.xlane.f32.xlu0 %v935
  %v937 = vpop.xlane.xlu0 %936
  %v938 = vsel %vm844, %v843, -inf
  %939 = vmax.xlane.f32.xlu0 %v938
  %v940 = vpop.xlane.xlu0 %939
  %v941 = vsub.f32 %v812, %v847
  %v942 = vsub.f32 %v813, %v850
  %v943 = vsub.f32 %v814, %v853
  %v944 = vsub.f32 %v815, %v856
  %v945 = vsub.f32 %v816, %v859
  %v946 = vsub.f32 %v817, %v862
  %v947 = vsub.f32 %v818, %v865
  %v948 = vsub.f32 %v819, %v868
  %v949 = vsub.f32 %v820, %v871
  %v950 = vsub.f32 %v821, %v874
  %v951 = vsub.f32 %v822, %v877
  %v952 = vsub.f32 %v823, %v880
  %v953 = vsub.f32 %v824, %v883
  %v954 = vsub.f32 %v825, %v886
  %v955 = vsub.f32 %v826, %v889
  %v956 = vsub.f32 %v827, %v892
  %v957 = vsub.f32 %v828, %v895
  %v958 = vsub.f32 %v829, %v898
  %v959 = vsub.f32 %v830, %v901
  %v960 = vsub.f32 %v831, %v904
  %v961 = vsub.f32 %v832, %v907
  %v962 = vsub.f32 %v833, %v910
  %v963 = vsub.f32 %v834, %v913
  %v964 = vsub.f32 %v835, %v916
  %v965 = vsub.f32 %v836, %v919
  %v966 = vsub.f32 %v837, %v922
  %v967 = vsub.f32 %v838, %v925
  %v968 = vsub.f32 %v839, %v928
  %v969 = vsub.f32 %v840, %v931
  %v970 = vsub.f32 %v841, %v934
  %v971 = vsub.f32 %v842, %v937
  %v972 = vsub.f32 %v843, %v940
  %v973 = vmul.f32 %v941, 1.442695
  %v974 = vpow.pop %v973
  %v975 = vmul.f32 %v942, 1.442695
  %v976 = vpow.pop %v975
  %v977 = vmul.f32 %v943, 1.442695
  %v978 = vpow.pop %v977
  %v979 = vmul.f32 %v944, 1.442695
  %v980 = vpow.pop %v979
  %v981 = vmul.f32 %v945, 1.442695
  %v982 = vpow.pop %v981
  %v983 = vmul.f32 %v946, 1.442695
  %v984 = vpow.pop %v983
  %v985 = vmul.f32 %v947, 1.442695
  %v986 = vpow.pop %v985
  %v987 = vmul.f32 %v948, 1.442695
  %v988 = vpow.pop %v987
  %v989 = vmul.f32 %v949, 1.442695
  %v990 = vpow.pop %v989
  %v991 = vmul.f32 %v950, 1.442695
  %v992 = vpow.pop %v991
  %v993 = vmul.f32 %v951, 1.442695
  %v994 = vpow.pop %v993
  %v995 = vmul.f32 %v952, 1.442695
  %v996 = vpow.pop %v995
  %v997 = vmul.f32 %v953, 1.442695
  %v998 = vpow.pop %v997
  %v999 = vmul.f32 %v954, 1.442695
  %v1000 = vpow.pop %v999
  %v1001 = vmul.f32 %v955, 1.442695
  %v1002 = vpow.pop %v1001
  %v1003 = vmul.f32 %v956, 1.442695
  %v1004 = vpow.pop %v1003
  %v1005 = vmul.f32 %v957, 1.442695
  %v1006 = vpow.pop %v1005
  %v1007 = vmul.f32 %v958, 1.442695
  %v1008 = vpow.pop %v1007
  %v1009 = vmul.f32 %v959, 1.442695
  %v1010 = vpow.pop %v1009
  %v1011 = vmul.f32 %v960, 1.442695
  %v1012 = vpow.pop %v1011
  %v1013 = vmul.f32 %v961, 1.442695
  %v1014 = vpow.pop %v1013
  %v1015 = vmul.f32 %v962, 1.442695
  %v1016 = vpow.pop %v1015
  %v1017 = vmul.f32 %v963, 1.442695
  %v1018 = vpow.pop %v1017
  %v1019 = vmul.f32 %v964, 1.442695
  %v1020 = vpow.pop %v1019
  %v1021 = vmul.f32 %v965, 1.442695
  %v1022 = vpow.pop %v1021
  %v1023 = vmul.f32 %v966, 1.442695
  %v1024 = vpow.pop %v1023
  %v1025 = vmul.f32 %v967, 1.442695
  %v1026 = vpow.pop %v1025
  %v1027 = vmul.f32 %v968, 1.442695
  %v1028 = vpow.pop %v1027
  %v1029 = vmul.f32 %v969, 1.442695
  %v1030 = vpow.pop %v1029
  %v1031 = vmul.f32 %v970, 1.442695
  %v1032 = vpow.pop %v1031
  %v1033 = vmul.f32 %v971, 1.442695
  %v1034 = vpow.pop %v1033
  %v1035 = vmul.f32 %v972, 1.442695
  %v1036 = vpow.pop %v1035
  %v1037 = vsel %vm844, %v974, 0.0
  %1038 = vadd.xlane.f32.xlu0 %v1037
  %v1039 = vpop.xlane.xlu0 %1038
  %v1040 = vsel %vm844, %v976, 0.0
  %1041 = vadd.xlane.f32.xlu0 %v1040
  %v1042 = vpop.xlane.xlu0 %1041
  %v1043 = vsel %vm844, %v978, 0.0
  %1044 = vadd.xlane.f32.xlu0 %v1043
  %v1045 = vpop.xlane.xlu0 %1044
  %v1046 = vsel %vm844, %v980, 0.0
  %1047 = vadd.xlane.f32.xlu0 %v1046
  %v1048 = vpop.xlane.xlu0 %1047
  %v1049 = vsel %vm844, %v982, 0.0
  %1050 = vadd.xlane.f32.xlu0 %v1049
  %v1051 = vpop.xlane.xlu0 %1050
  %v1052 = vsel %vm844, %v984, 0.0
  %1053 = vadd.xlane.f32.xlu0 %v1052
  %v1054 = vpop.xlane.xlu0 %1053
  %v1055 = vsel %vm844, %v986, 0.0
  %1056 = vadd.xlane.f32.xlu0 %v1055
  %v1057 = vpop.xlane.xlu0 %1056
  %v1058 = vsel %vm844, %v988, 0.0
  %1059 = vadd.xlane.f32.xlu0 %v1058
  %v1060 = vpop.xlane.xlu0 %1059
  %v1061 = vsel %vm844, %v990, 0.0
  %1062 = vadd.xlane.f32.xlu0 %v1061
  %v1063 = vpop.xlane.xlu0 %1062
  %v1064 = vsel %vm844, %v992, 0.0
  %1065 = vadd.xlane.f32.xlu0 %v1064
  %v1066 = vpop.xlane.xlu0 %1065
  %v1067 = vsel %vm844, %v994, 0.0
  %1068 = vadd.xlane.f32.xlu0 %v1067
  %v1069 = vpop.xlane.xlu0 %1068
  %v1070 = vsel %vm844, %v996, 0.0
  %1071 = vadd.xlane.f32.xlu0 %v1070
  %v1072 = vpop.xlane.xlu0 %1071
  %v1073 = vsel %vm844, %v998, 0.0
  %1074 = vadd.xlane.f32.xlu0 %v1073
  %v1075 = vpop.xlane.xlu0 %1074
  %v1076 = vsel %vm844, %v1000, 0.0
  %1077 = vadd.xlane.f32.xlu0 %v1076
  %v1078 = vpop.xlane.xlu0 %1077
  %v1079 = vsel %vm844, %v1002, 0.0
  %1080 = vadd.xlane.f32.xlu0 %v1079
  %v1081 = vpop.xlane.xlu0 %1080
  %v1082 = vsel %vm844, %v1004, 0.0
  %1083 = vadd.xlane.f32.xlu0 %v1082
  %v1084 = vpop.xlane.xlu0 %1083
  %v1085 = vsel %vm844, %v1006, 0.0
  %1086 = vadd.xlane.f32.xlu0 %v1085
  %v1087 = vpop.xlane.xlu0 %1086
  %v1088 = vsel %vm844, %v1008, 0.0
  %1089 = vadd.xlane.f32.xlu0 %v1088
  %v1090 = vpop.xlane.xlu0 %1089
  %v1091 = vsel %vm844, %v1010, 0.0
  %1092 = vadd.xlane.f32.xlu0 %v1091
  %v1093 = vpop.xlane.xlu0 %1092
  %v1094 = vsel %vm844, %v1012, 0.0
  %1095 = vadd.xlane.f32.xlu0 %v1094
  %v1096 = vpop.xlane.xlu0 %1095
  %v1097 = vsel %vm844, %v1014, 0.0
  %1098 = vadd.xlane.f32.xlu0 %v1097
  %v1099 = vpop.xlane.xlu0 %1098
  %v1100 = vsel %vm844, %v1016, 0.0
  %1101 = vadd.xlane.f32.xlu0 %v1100
  %v1102 = vpop.xlane.xlu0 %1101
  %v1103 = vsel %vm844, %v1018, 0.0
  %1104 = vadd.xlane.f32.xlu0 %v1103
  %v1105 = vpop.xlane.xlu0 %1104
  %v1106 = vsel %vm844, %v1020, 0.0
  %1107 = vadd.xlane.f32.xlu0 %v1106
  %v1108 = vpop.xlane.xlu0 %1107
  %v1109 = vsel %vm844, %v1022, 0.0
  %1110 = vadd.xlane.f32.xlu0 %v1109
  %v1111 = vpop.xlane.xlu0 %1110
  %v1112 = vsel %vm844, %v1024, 0.0
  %1113 = vadd.xlane.f32.xlu0 %v1112
  %v1114 = vpop.xlane.xlu0 %1113
  %v1115 = vsel %vm844, %v1026, 0.0
  %1116 = vadd.xlane.f32.xlu0 %v1115
  %v1117 = vpop.xlane.xlu0 %1116
  %v1118 = vsel %vm844, %v1028, 0.0
  %1119 = vadd.xlane.f32.xlu0 %v1118
  %v1120 = vpop.xlane.xlu0 %1119
  %v1121 = vsel %vm844, %v1030, 0.0
  %1122 = vadd.xlane.f32.xlu0 %v1121
  %v1123 = vpop.xlane.xlu0 %1122
  %v1124 = vsel %vm844, %v1032, 0.0
  %1125 = vadd.xlane.f32.xlu0 %v1124
  %v1126 = vpop.xlane.xlu0 %1125
  %v1127 = vsel %vm844, %v1034, 0.0
  %1128 = vadd.xlane.f32.xlu0 %v1127
  %v1129 = vpop.xlane.xlu0 %1128
  %v1130 = vsel %vm844, %v1036, 0.0
  %1131 = vadd.xlane.f32.xlu0 %v1130
  %v1132 = vpop.xlane.xlu0 %1131
  %v1133 = vrcp.pop %v1039
  %v1134 = vrcp.pop %v1042
  %v1135 = vrcp.pop %v1045
  %v1136 = vrcp.pop %v1048
  %v1137 = vrcp.pop %v1051
  %v1138 = vrcp.pop %v1054
  %v1139 = vrcp.pop %v1057
  %v1140 = vrcp.pop %v1060
  %v1141 = vrcp.pop %v1063
  %v1142 = vrcp.pop %v1066
  %v1143 = vrcp.pop %v1069
  %v1144 = vrcp.pop %v1072
  %v1145 = vrcp.pop %v1075
  %v1146 = vrcp.pop %v1078
  %v1147 = vrcp.pop %v1081
  %v1148 = vrcp.pop %v1084
  %v1149 = vrcp.pop %v1087
  %v1150 = vrcp.pop %v1090
  %v1151 = vrcp.pop %v1093
  %v1152 = vrcp.pop %v1096
  %v1153 = vrcp.pop %v1099
  %v1154 = vrcp.pop %v1102
  %v1155 = vrcp.pop %v1105
  %v1156 = vrcp.pop %v1108
  %v1157 = vrcp.pop %v1111
  %v1158 = vrcp.pop %v1114
  %v1159 = vrcp.pop %v1117
  %v1160 = vrcp.pop %v1120
  %v1161 = vrcp.pop %v1123
  %v1162 = vrcp.pop %v1126
  %v1163 = vrcp.pop %v1129
  %v1164 = vrcp.pop %v1132
  %v1165 = vmul.f32 %v974, %v1133
  %v1166 = vmul.f32 %v976, %v1134
  %v1167 = vmul.f32 %v978, %v1135
  %v1168 = vmul.f32 %v980, %v1136
  %v1169 = vmul.f32 %v982, %v1137
  %v1170 = vmul.f32 %v984, %v1138
  %v1171 = vmul.f32 %v986, %v1139
  %v1172 = vmul.f32 %v988, %v1140
  %v1173 = vmul.f32 %v990, %v1141
  %v1174 = vmul.f32 %v992, %v1142
  %v1175 = vmul.f32 %v994, %v1143
  %v1176 = vmul.f32 %v996, %v1144
  %v1177 = vmul.f32 %v998, %v1145
  %v1178 = vmul.f32 %v1000, %v1146
  %v1179 = vmul.f32 %v1002, %v1147
  %v1180 = vmul.f32 %v1004, %v1148
  %v1181 = vmul.f32 %v1006, %v1149
  %v1182 = vmul.f32 %v1008, %v1150
  %v1183 = vmul.f32 %v1010, %v1151
  %v1184 = vmul.f32 %v1012, %v1152
  %v1185 = vmul.f32 %v1014, %v1153
  %v1186 = vmul.f32 %v1016, %v1154
  %v1187 = vmul.f32 %v1018, %v1155
  %v1188 = vmul.f32 %v1020, %v1156
  %v1189 = vmul.f32 %v1022, %v1157
  %v1190 = vmul.f32 %v1024, %v1158
  %v1191 = vmul.f32 %v1026, %v1159
  %v1192 = vmul.f32 %v1028, %v1160
  %v1193 = vmul.f32 %v1030, %v1161
  %v1194 = vmul.f32 %v1032, %v1162
  %v1195 = vmul.f32 %v1034, %v1163
  %v1196 = vmul.f32 %v1036, %v1164
  %v1198 = vsel %vm844, %v1165, 0
  %v1201 = vsel %vm844, %v1166, 0
  %v1204 = vsel %vm844, %v1167, 0
  %v1207 = vsel %vm844, %v1168, 0
  %v1210 = vsel %vm844, %v1169, 0
  %v1213 = vsel %vm844, %v1170, 0
  %v1216 = vsel %vm844, %v1171, 0
  %v1219 = vsel %vm844, %v1172, 0
  %v1222 = vsel %vm844, %v1173, 0
  %v1225 = vsel %vm844, %v1174, 0
  %v1228 = vsel %vm844, %v1175, 0
  %v1231 = vsel %vm844, %v1176, 0
  %v1234 = vsel %vm844, %v1177, 0
  %v1237 = vsel %vm844, %v1178, 0
  %v1240 = vsel %vm844, %v1179, 0
  %v1243 = vsel %vm844, %v1180, 0
  %v1246 = vsel %vm844, %v1181, 0
  %v1249 = vsel %vm844, %v1182, 0
  %v1252 = vsel %vm844, %v1183, 0
  %v1255 = vsel %vm844, %v1184, 0
  %v1258 = vsel %vm844, %v1185, 0
  %v1261 = vsel %vm844, %v1186, 0
  %v1264 = vsel %vm844, %v1187, 0
  %v1267 = vsel %vm844, %v1188, 0
  %v1270 = vsel %vm844, %v1189, 0
  %v1273 = vsel %vm844, %v1190, 0
  %v1276 = vsel %vm844, %v1191, 0
  %v1279 = vsel %vm844, %v1192, 0
  %v1282 = vsel %vm844, %v1193, 0
  %v1285 = vsel %vm844, %v1194, 0
  %v1288 = vsel %vm844, %v1195, 0
  %v1291 = vsel %vm844, %v1196, 0
  %1293 = vmatpush.msra.mxu0 0.0
  %1294 = vmatpush.msra.mxu0 0.0
  %1295 = vmatpush.msra.mxu0 0.0
  %1296 = vmatpush.msra.mxu0 0.0
  %1297 = vmatpush.msra.mxu0 0.0
  %1298 = vmatpush.msra.mxu0 0.0
  %1299 = vmatpush.msra.mxu0 0.0
  %1300 = vmatpush.msra.mxu0 0.0
  %1301 = vmatpush.msra.mxu0 0.0
  %1302 = vmatpush.msra.mxu0 0.0
  %1303 = vmatpush.msra.mxu0 0.0
  %1304 = vmatpush.msra.mxu0 0.0
  %1305 = vmatpush.msra.mxu0 0.0
  %1306 = vmatpush.msra.mxu0 0.0
  %1307 = vmatpush.msra.mxu0 0.0
  %1308 = vmatpush.msra.mxu0 %v50
  %1309 = vmatmul.f32.gmra.mxu0 %v1198
  %v1310 = vpop.f32.mrf.mxu0
  %v1311 = vadd.f32 0.0, %v1310
  %1312 = vmatmul.f32.gmra.mxu0 %v1201
  %v1313 = vpop.f32.mrf.mxu0
  %v1314 = vadd.f32 0.0, %v1313
  %1315 = vmatmul.f32.gmra.mxu0 %v1204
  %v1316 = vpop.f32.mrf.mxu0
  %v1317 = vadd.f32 0.0, %v1316
  %1318 = vmatmul.f32.gmra.mxu0 %v1207
  %v1319 = vpop.f32.mrf.mxu0
  %v1320 = vadd.f32 0.0, %v1319
  %1321 = vmatmul.f32.gmra.mxu0 %v1210
  %v1322 = vpop.f32.mrf.mxu0
  %v1323 = vadd.f32 0.0, %v1322
  %1324 = vmatmul.f32.gmra.mxu0 %v1213
  %v1325 = vpop.f32.mrf.mxu0
  %v1326 = vadd.f32 0.0, %v1325
  %1327 = vmatmul.f32.gmra.mxu0 %v1216
  %v1328 = vpop.f32.mrf.mxu0
  %v1329 = vadd.f32 0.0, %v1328
  %1330 = vmatmul.f32.gmra.mxu0 %v1219
  %v1331 = vpop.f32.mrf.mxu0
  %v1332 = vadd.f32 0.0, %v1331
  %1333 = vmatmul.f32.gmra.mxu0 %v1222
  %v1334 = vpop.f32.mrf.mxu0
  %v1335 = vadd.f32 0.0, %v1334
  %1336 = vmatmul.f32.gmra.mxu0 %v1225
  %v1337 = vpop.f32.mrf.mxu0
  %v1338 = vadd.f32 0.0, %v1337
  %1339 = vmatmul.f32.gmra.mxu0 %v1228
  %v1340 = vpop.f32.mrf.mxu0
  %v1341 = vadd.f32 0.0, %v1340
  %1342 = vmatmul.f32.gmra.mxu0 %v1231
  %v1343 = vpop.f32.mrf.mxu0
  %v1344 = vadd.f32 0.0, %v1343
  %1345 = vmatmul.f32.gmra.mxu0 %v1234
  %v1346 = vpop.f32.mrf.mxu0
  %v1347 = vadd.f32 0.0, %v1346
  %1348 = vmatmul.f32.gmra.mxu0 %v1237
  %v1349 = vpop.f32.mrf.mxu0
  %v1350 = vadd.f32 0.0, %v1349
  %1351 = vmatmul.f32.gmra.mxu0 %v1240
  %v1352 = vpop.f32.mrf.mxu0
  %v1353 = vadd.f32 0.0, %v1352
  %1354 = vmatmul.f32.gmra.mxu0 %v1243
  %v1355 = vpop.f32.mrf.mxu0
  %v1356 = vadd.f32 0.0, %v1355
  %1357 = vmatmul.f32.gmra.mxu0 %v1246
  %v1358 = vpop.f32.mrf.mxu0
  %v1359 = vadd.f32 0.0, %v1358
  %1360 = vmatmul.f32.gmra.mxu0 %v1249
  %v1361 = vpop.f32.mrf.mxu0
  %v1362 = vadd.f32 0.0, %v1361
  %1363 = vmatmul.f32.gmra.mxu0 %v1252
  %v1364 = vpop.f32.mrf.mxu0
  %v1365 = vadd.f32 0.0, %v1364
  %1366 = vmatmul.f32.gmra.mxu0 %v1255
  %v1367 = vpop.f32.mrf.mxu0
  %v1368 = vadd.f32 0.0, %v1367
  %1369 = vmatmul.f32.gmra.mxu0 %v1258
  %v1370 = vpop.f32.mrf.mxu0
  %v1371 = vadd.f32 0.0, %v1370
  %1372 = vmatmul.f32.gmra.mxu0 %v1261
  %v1373 = vpop.f32.mrf.mxu0
  %v1374 = vadd.f32 0.0, %v1373
  %1375 = vmatmul.f32.gmra.mxu0 %v1264
  %v1376 = vpop.f32.mrf.mxu0
  %v1377 = vadd.f32 0.0, %v1376
  %1378 = vmatmul.f32.gmra.mxu0 %v1267
  %v1379 = vpop.f32.mrf.mxu0
  %v1380 = vadd.f32 0.0, %v1379
  %1381 = vmatmul.f32.gmra.mxu0 %v1270
  %v1382 = vpop.f32.mrf.mxu0
  %v1383 = vadd.f32 0.0, %v1382
  %1384 = vmatmul.f32.gmra.mxu0 %v1273
  %v1385 = vpop.f32.mrf.mxu0
  %v1386 = vadd.f32 0.0, %v1385
  %1387 = vmatmul.f32.gmra.mxu0 %v1276
  %v1388 = vpop.f32.mrf.mxu0
  %v1389 = vadd.f32 0.0, %v1388
  %1390 = vmatmul.f32.gmra.mxu0 %v1279
  %v1391 = vpop.f32.mrf.mxu0
  %v1392 = vadd.f32 0.0, %v1391
  %1393 = vmatmul.f32.gmra.mxu0 %v1282
  %v1394 = vpop.f32.mrf.mxu0
  %v1395 = vadd.f32 0.0, %v1394
  %1396 = vmatmul.f32.gmra.mxu0 %v1285
  %v1397 = vpop.f32.mrf.mxu0
  %v1398 = vadd.f32 0.0, %v1397
  %1399 = vmatmul.f32.gmra.mxu0 %v1288
  %v1400 = vpop.f32.mrf.mxu0
  %v1401 = vadd.f32 0.0, %v1400
  %1402 = vmatmul.f32.gmra.mxu0 %v1291
  %v1403 = vpop.f32.mrf.mxu0
  %v1404 = vadd.f32 0.0, %v1403
  %1405 = vdwg.mxu0
  %1438 = vrot.lane.b32.xlu0 %v1311, 32
  %v1439 = vpop.permute.xlu0 %1438
  %1440 = vrot.lane.b32.xlu0 %v1314, 32
  %v1441 = vpop.permute.xlu0 %1440
  %1442 = vrot.lane.b32.xlu0 %v1317, 32
  %v1443 = vpop.permute.xlu0 %1442
  %1444 = vrot.lane.b32.xlu0 %v1320, 32
  %v1445 = vpop.permute.xlu0 %1444
  %1446 = vrot.lane.b32.xlu0 %v1323, 32
  %v1447 = vpop.permute.xlu0 %1446
  %1448 = vrot.lane.b32.xlu0 %v1326, 32
  %v1449 = vpop.permute.xlu0 %1448
  %1450 = vrot.lane.b32.xlu0 %v1329, 32
  %v1451 = vpop.permute.xlu0 %1450
  %1452 = vrot.lane.b32.xlu0 %v1332, 32
  %v1453 = vpop.permute.xlu0 %1452
  %1454 = vrot.lane.b32.xlu0 %v1335, 32
  %v1455 = vpop.permute.xlu0 %1454
  %1456 = vrot.lane.b32.xlu0 %v1338, 32
  %v1457 = vpop.permute.xlu0 %1456
  %1458 = vrot.lane.b32.xlu0 %v1341, 32
  %v1459 = vpop.permute.xlu0 %1458
  %1460 = vrot.lane.b32.xlu0 %v1344, 32
  %v1461 = vpop.permute.xlu0 %1460
  %1462 = vrot.lane.b32.xlu0 %v1347, 32
  %v1463 = vpop.permute.xlu0 %1462
  %1464 = vrot.lane.b32.xlu0 %v1350, 32
  %v1465 = vpop.permute.xlu0 %1464
  %1466 = vrot.lane.b32.xlu0 %v1353, 32
  %v1467 = vpop.permute.xlu0 %1466
  %1468 = vrot.lane.b32.xlu0 %v1356, 32
  %v1469 = vpop.permute.xlu0 %1468
  %1470 = vrot.lane.b32.xlu0 %v1359, 32
  %v1471 = vpop.permute.xlu0 %1470
  %1472 = vrot.lane.b32.xlu0 %v1362, 32
  %v1473 = vpop.permute.xlu0 %1472
  %1474 = vrot.lane.b32.xlu0 %v1365, 32
  %v1475 = vpop.permute.xlu0 %1474
  %1476 = vrot.lane.b32.xlu0 %v1368, 32
  %v1477 = vpop.permute.xlu0 %1476
  %1478 = vrot.lane.b32.xlu0 %v1371, 32
  %v1479 = vpop.permute.xlu0 %1478
  %1480 = vrot.lane.b32.xlu0 %v1374, 32
  %v1481 = vpop.permute.xlu0 %1480
  %1482 = vrot.lane.b32.xlu0 %v1377, 32
  %v1483 = vpop.permute.xlu0 %1482
  %1484 = vrot.lane.b32.xlu0 %v1380, 32
  %v1485 = vpop.permute.xlu0 %1484
  %1486 = vrot.lane.b32.xlu0 %v1383, 32
  %v1487 = vpop.permute.xlu0 %1486
  %1488 = vrot.lane.b32.xlu0 %v1386, 32
  %v1489 = vpop.permute.xlu0 %1488
  %1490 = vrot.lane.b32.xlu0 %v1389, 32
  %v1491 = vpop.permute.xlu0 %1490
  %1492 = vrot.lane.b32.xlu0 %v1392, 32
  %v1493 = vpop.permute.xlu0 %1492
  %1494 = vrot.lane.b32.xlu0 %v1395, 32
  %v1495 = vpop.permute.xlu0 %1494
  %1496 = vrot.lane.b32.xlu0 %v1398, 32
  %v1497 = vpop.permute.xlu0 %1496
  %1498 = vrot.lane.b32.xlu0 %v1401, 32
  %v1499 = vpop.permute.xlu0 %1498
  %1500 = vrot.lane.b32.xlu0 %v1404, 32
  %v1501 = vpop.permute.xlu0 %1500
  %v1534 = vsel %vm116, %v17, %v1439
  %v1535 = vsel %vm116, %v18, %v1441
  %v1536 = vsel %vm116, %v19, %v1443
  %v1537 = vsel %vm116, %v20, %v1445
  %v1538 = vsel %vm116, %v21, %v1447
  %v1539 = vsel %vm116, %v22, %v1449
  %v1540 = vsel %vm116, %v23, %v1451
  %v1541 = vsel %vm116, %v24, %v1453
  %v1542 = vsel %vm116, %v25, %v1455
  %v1543 = vsel %vm116, %v26, %v1457
  %v1544 = vsel %vm116, %v27, %v1459
  %v1545 = vsel %vm116, %v28, %v1461
  %v1546 = vsel %vm116, %v29, %v1463
  %v1547 = vsel %vm116, %v30, %v1465
  %v1548 = vsel %vm116, %v31, %v1467
  %v1549 = vsel %vm116, %v32, %v1469
  %v1550 = vsel %vm116, %v33, %v1471
  %v1551 = vsel %vm116, %v34, %v1473
  %v1552 = vsel %vm116, %v35, %v1475
  %v1553 = vsel %vm116, %v36, %v1477
  %v1554 = vsel %vm116, %v37, %v1479
  %v1555 = vsel %vm116, %v38, %v1481
  %v1556 = vsel %vm116, %v39, %v1483
  %v1557 = vsel %vm116, %v40, %v1485
  %v1558 = vsel %vm116, %v41, %v1487
  %v1559 = vsel %vm116, %v42, %v1489
  %v1560 = vsel %vm116, %v43, %v1491
  %v1561 = vsel %vm116, %v44, %v1493
  %v1562 = vsel %vm116, %v45, %v1495
  %v1563 = vsel %vm116, %v46, %v1497
  %v1564 = vsel %vm116, %v47, %v1499
  %v1565 = vsel %vm116, %v48, %v1501
  %vm1566 = vcmask 523264
  %1567 = vst.msk [vmem:[%s4] sm:$0xff] %vm1566, %v1534
  %1568 = vst.msk [vmem:[%s4 + $0x8] sm:$0xff] %vm1566, %v1535
  %1569 = vst.msk [vmem:[%s4 + $0x10] sm:$0xff] %vm1566, %v1536
  %1570 = vst.msk [vmem:[%s4 + $0x18] sm:$0xff] %vm1566, %v1537
  %1571 = vst.msk [vmem:[%s4 + $0x20] sm:$0xff] %vm1566, %v1538
  %1572 = vst.msk [vmem:[%s4 + $0x28] sm:$0xff] %vm1566, %v1539
  %1573 = vst.msk [vmem:[%s4 + $0x30] sm:$0xff] %vm1566, %v1540
  %1574 = vst.msk [vmem:[%s4 + $0x38] sm:$0xff] %vm1566, %v1541
  %1575 = vst.msk [vmem:[%s4 + $0x40] sm:$0xff] %vm1566, %v1542
  %1576 = vst.msk [vmem:[%s4 + $0x48] sm:$0xff] %vm1566, %v1543
  %1577 = vst.msk [vmem:[%s4 + $0x50] sm:$0xff] %vm1566, %v1544
  %1578 = vst.msk [vmem:[%s4 + $0x58] sm:$0xff] %vm1566, %v1545
  %1579 = vst.msk [vmem:[%s4 + $0x60] sm:$0xff] %vm1566, %v1546
  %1580 = vst.msk [vmem:[%s4 + $0x68] sm:$0xff] %vm1566, %v1547
  %1581 = vst.msk [vmem:[%s4 + $0x70] sm:$0xff] %vm1566, %v1548
  %1582 = vst.msk [vmem:[%s4 + $0x78] sm:$0xff] %vm1566, %v1549
  %1583 = vst.msk [vmem:[%s4 + $0x80] sm:$0xff] %vm1566, %v1550
  %1584 = vst.msk [vmem:[%s4 + $0x88] sm:$0xff] %vm1566, %v1551
  %1585 = vst.msk [vmem:[%s4 + $0x90] sm:$0xff] %vm1566, %v1552
  %1586 = vst.msk [vmem:[%s4 + $0x98] sm:$0xff] %vm1566, %v1553
  %1587 = vst.msk [vmem:[%s4 + $0xa0] sm:$0xff] %vm1566, %v1554
  %1588 = vst.msk [vmem:[%s4 + $0xa8] sm:$0xff] %vm1566, %v1555
  %1589 = vst.msk [vmem:[%s4 + $0xb0] sm:$0xff] %vm1566, %v1556
  %1590 = vst.msk [vmem:[%s4 + $0xb8] sm:$0xff] %vm1566, %v1557
  %1591 = vst.msk [vmem:[%s4 + $0xc0] sm:$0xff] %vm1566, %v1558
  %1592 = vst.msk [vmem:[%s4 + $0xc8] sm:$0xff] %vm1566, %v1559
  %1593 = vst.msk [vmem:[%s4 + $0xd0] sm:$0xff] %vm1566, %v1560
  %1594 = vst.msk [vmem:[%s4 + $0xd8] sm:$0xff] %vm1566, %v1561
  %1595 = vst.msk [vmem:[%s4 + $0xe0] sm:$0xff] %vm1566, %v1562
  %1596 = vst.msk [vmem:[%s4 + $0xe8] sm:$0xff] %vm1566, %v1563
  %1597 = vst.msk [vmem:[%s4 + $0xf0] sm:$0xff] %vm1566, %v1564
  %1598 = vst.msk [vmem:[%s4 + $0xf8] sm:$0xff] %vm1566, %v1565
  // Predicated region
  $region18: #{tpu_custom_call.1} parent=0 // pred_check
    _
  $region19: #{tpu_custom_call.1} parent=0 // pred_check_branch
    %1600 = sbr.rel (0) target = $region21
  $region20: #{tpu_custom_call.1} parent=0 // pred_region
    _
  $region21: #{tpu_custom_call.1} parent=0 // pred_fallthru
    _
  // Predicated region
  $region22: #{tpu_custom_call.1} parent=0 // pred_check
    _
  $region23: #{tpu_custom_call.1} parent=0 // pred_check_branch
    %1602 = sbr.rel (0) target = $region25
  $region24: #{tpu_custom_call.1} parent=0 // pred_region
    _
  $region25: #{tpu_custom_call.1} parent=0 // pred_fallthru
    _

</llo_original>
